<compile_context>
chip_gen: v7x
topology: tpu7x:2x2x1
jax: 0.10.0
libtpu: 0.0.40
codegen_flags: <defaults>
</compile_context>

<pallas_src>
import jax
import jax.numpy as jnp
from jax.experimental import pallas as pl
from jax.experimental.pallas import tpu as pltpu

# ---------------- model hyper-parameters (small, forward-consistent) --------
B = 8          # batch
F = 16         # numUnits (input feature dim)
H = 32         # hidden width of encoder/decoder MLPs
L = 8          # style latent dim  -> content dim = 2L = 16 = embed_dim
BETA = 0.5
ALPHA = 0.3

# Precomputed loss scale constants: sum * constant == the reference means.
C_REC = 1.0 / (2 * B * F)          # 0.5 * (mse1 + mse2)
C_AUX = 0.5 / B                    # 0.5 * sum of the four per-column MSEs
C_KL = -0.5 * BETA / (B * L)       # BETA * (mean kl1 + mean kl2)
C_ALG = ALPHA / (B * 2 * L)        # ALPHA * mean content-alignment error


def _dot_bf16(a, b):
    """MXU matmul: bf16 operands (weights already bf16), f32 accumulation."""
    return jnp.dot(a.astype(jnp.bfloat16), b, preferred_element_type=jnp.float32)


def swapvae_kernel(d_ref, w32_ref, w48_ref, w16_ref, loss_ref):
    f32 = jnp.float32

    # ---- carve the data slab (8-aligned sublane slices, full lanes) --------
    x = d_ref[0:B, :]                # [B, F]
    ypad = d_ref[B:2 * B, :]         # [B, F]   y in lanes 0:2, zeros elsewhere
    noise = d_ref[2 * B:4 * B, :]    # [2B, F]
    mask = d_ref[4 * B:6 * B, :]     # [2B, F]
    epspad = d_ref[6 * B:8 * B, :]   # [2B, F]  eps in lanes 0:L

    # ---- carve the bf16 weight slabs (16-row-aligned segments) -------------
    we1 = w32_ref[0:16, :]                     # [F, H]
    we2 = w32_ref[16:48, :]                    # [H, H]
    we3 = w32_ref[48:80, :]                    # [H, 4L] = [content | mu | logvar]
    wd2 = w32_ref[80:112, :]                   # [H, H]
    be1 = w32_ref[112:113, :].astype(f32)
    be2 = w32_ref[128:129, :].astype(f32)
    be3 = w32_ref[144:145, :].astype(f32)
    bd2 = w32_ref[160:161, :].astype(f32)

    wf = w48_ref[0:48, :]                      # fused [decoder-1st | aux-1st]
    bf_ = w48_ref[48:49, :].astype(f32)        # [bd1 | bl1]

    wd3 = w16_ref[0:32, :]                     # [H, F]
    wo = w16_ref[32:48, :]                     # [2L, F] = [wo1 | wo2 | 0...]
    bd3 = w16_ref[48:49, :].astype(f32)
    bo = w16_ref[64:65, :].astype(f32)

    # ---- randTrfm on both stacked views (x replicated via VMEM sublane copy)
    x2v = jnp.concatenate([x, x], axis=0)              # [2B, F]
    x12 = jnp.where(mask > 0.6, 0.0, x2v + noise)

    # ---- encoder (single pass over the stacked batch) ----------------------
    h1 = jnp.maximum(_dot_bf16(x12, we1) + be1, 0.0)   # [2B, H]  skip1
    h2 = jnp.maximum(_dot_bf16(h1, we2) + be2, 0.0)    # [2B, H]  skip2
    enc = _dot_bf16(h2, we3) + be3                     # [2B, 4L]

    # reparameterization (eps supplied externally for determinism)
    zmu = enc[:, 2 * L:3 * L]                          # [2B, L]
    zlv = enc[:, 3 * L:4 * L]                          # [2B, L]
    zs = zmu + jnp.exp(0.5 * zlv) * epspad[:, 0:L]     # [2B, L]

    # ---- fused decoder-first + aux-first layer (one MXU push) --------------
    # lanes 0:32 = enc (content|mu|logvar), 32:40 = zs, 40:48 = dummy zs copy
    # (mu/logvar/dummy weight rows are zero, so they contribute nothing).
    zcat = jnp.concatenate([enc, zs, zs], axis=1)      # [2B, 48]
    pre = _dot_bf16(zcat, wf) + bf_                    # [2B, H + 2L]
    d1 = jnp.maximum(pre[:, 0:H] + h2, 0.0)            # Decoder: +skip2 (=h2)
    ahp = pre[:, H:H + 2 * L]
    ah = jnp.where(ahp >= 0, ahp, 0.7 * ahp)           # leaky relu, slope 0.7

    d2 = jnp.maximum(_dot_bf16(d1, wd2) + bd2 + h1, 0.0)  # Decoder: +skip1 (=h1)
    dec = _dot_bf16(d2, wd3) + bd3                        # [2B, F]
    o = jnp.maximum(_dot_bf16(ah, wo) + bo, 0.0)          # [2B, F], lanes 2:F == 0

    # ---- losses: sums * static constants (fused recon+aux accumulator) -----
    ycat = jnp.concatenate([ypad, ypad], axis=0)       # [2B, F], lanes 2:F == 0
    re = x12 - dec
    ae = o - ycat
    combined = C_REC * (re * re) + C_AUX * (ae * ae)   # [2B, F]
    # TODO(synk): PyTorch casts aux targets to double; computed here in f32.
    kl_term = 1.0 + zlv - zmu * zmu - jnp.exp(zlv)     # [2B, L]
    algd = enc[0:B, 0:2 * L] - enc[B:2 * B, 0:2 * L]   # [B, 2L]
    total = (jnp.sum(combined)
             + C_KL * jnp.sum(kl_term)
             + C_ALG * jnp.sum(algd * algd))
    loss_ref[...] = total.reshape(1, 1)


def init_params(key):
    """Deterministic synthetic parameters (shapes follow the module __init__)."""
    ks = jax.random.split(key, 20)
    s = 0.1
    p = {}
    # encoder MLP: F -> H -> H -> (2L | L | L)
    p["we1"] = jax.random.normal(ks[0], (F, H), jnp.float32) * s
    p["be1"] = jnp.zeros((1, H), jnp.float32)
    p["we2"] = jax.random.normal(ks[1], (H, H), jnp.float32) * s
    p["be2"] = jnp.zeros((1, H), jnp.float32)
    p["we3c"] = jax.random.normal(ks[2], (H, 2 * L), jnp.float32) * s
    p["be3c"] = jnp.zeros((1, 2 * L), jnp.float32)
    p["we3m"] = jax.random.normal(ks[3], (H, L), jnp.float32) * s
    p["be3m"] = jnp.zeros((1, L), jnp.float32)
    p["we3v"] = jax.random.normal(ks[4], (H, L), jnp.float32) * s
    p["be3v"] = jnp.zeros((1, L), jnp.float32)
    # decoder MLP: (2L + L) -> H -> H -> F  (Wd1 split into content/style rows)
    p["wd1c"] = jax.random.normal(ks[5], (2 * L, H), jnp.float32) * s
    p["wd1s"] = jax.random.normal(ks[6], (L, H), jnp.float32) * s
    p["bd1"] = jnp.zeros((1, H), jnp.float32)
    p["wd2"] = jax.random.normal(ks[7], (H, H), jnp.float32) * s
    p["bd2"] = jnp.zeros((1, H), jnp.float32)
    p["wd3"] = jax.random.normal(ks[8], (H, F), jnp.float32) * s
    p["bd3"] = jnp.zeros((1, F), jnp.float32)
    # Aux_MultiOutput(embed_dim = 2L)
    p["wl1"] = jax.random.normal(ks[9], (2 * L, 2 * L), jnp.float32) * s
    p["bl1"] = jnp.zeros((1, 2 * L), jnp.float32)
    p["wo1"] = jax.random.normal(ks[10], (2 * L, 1), jnp.float32) * s
    p["bo1"] = jnp.zeros((1, 1), jnp.float32)
    p["wo2"] = jax.random.normal(ks[11], (2 * L, 1), jnp.float32) * s
    p["bo2"] = jnp.zeros((1, 1), jnp.float32)
    return p


def _bias_block(b):
    """Place a [1, W] bias on its own 16-row-aligned block (bf16 tile = 16 rows)."""
    return jnp.concatenate([b, jnp.zeros((15, b.shape[1]), jnp.float32)], axis=0)


def pack_param_slabs(p):
    """Pack all parameters ONCE into three lane-dense bf16 slabs."""
    f32, bf16 = jnp.float32, jnp.bfloat16
    we3 = jnp.concatenate([p["we3c"], p["we3m"], p["we3v"]], axis=1)   # [H, 4L]
    be3 = jnp.concatenate([p["be3c"], p["be3m"], p["be3v"]], axis=1)   # [1, 4L]
    w32 = jnp.concatenate(
        [p["we1"], p["we2"], we3, p["wd2"],
         _bias_block(p["be1"]), _bias_block(p["be2"]),
         _bias_block(be3), _bias_block(p["bd2"])], axis=0)             # [176, 32]

    # Fused (decoder-first | aux-first) weight, rows match zcat lane layout.
    top = jnp.concatenate([p["wd1c"], p["wl1"]], axis=1)               # content rows
    bot = jnp.concatenate([p["wd1s"], jnp.zeros((L, 2 * L), f32)], axis=1)  # zs rows
    bfz = jnp.concatenate([p["bd1"], p["bl1"]], axis=1)                # [1, H+2L]
    w48 = jnp.concatenate(
        [top,
         jnp.zeros((2 * L, H + 2 * L), f32),       # mu | logvar rows -> zero
         bot,
         jnp.zeros((L, H + 2 * L), f32),           # dummy zs-copy rows -> zero
         _bias_block(bfz)], axis=0)                                    # [64, 48]

    wo = jnp.concatenate([p["wo1"], p["wo2"],
                          jnp.zeros((2 * L, F - 2), f32)], axis=1)     # [2L, F]
    bo = jnp.concatenate([p["bo1"], p["bo2"],
                          jnp.zeros((1, F - 2), f32)], axis=1)         # [1, F]
    w16 = jnp.concatenate([p["wd3"], wo,
                           _bias_block(p["bd3"]), _bias_block(bo)], axis=0)  # [80, 16]
    return w32.astype(bf16), w48.astype(bf16), w16.astype(bf16)


@jax.jit
def swapvae_forward(x, y, noise, mask, eps, w32, w48, w16):
    # Per-call data glue only: pack activations/RNG into ONE [64, 16] f32 slab.
    ypad = jnp.pad(y, ((0, 0), (0, F - y.shape[1])))
    epspad = jnp.pad(eps, ((0, 0), (0, F - L)))
    data = jnp.concatenate([x, ypad, noise, mask, epspad], axis=0).astype(jnp.float32)

    vmem = pl.BlockSpec(memory_space=pltpu.MemorySpace.VMEM)
    loss = pl.pallas_call(
        swapvae_kernel,
        out_shape=jax.ShapeDtypeStruct((1, 1), jnp.float32),
        in_specs=[vmem, vmem, vmem, vmem],
        out_specs=vmem,
    )(data, w32, w48, w16)
    return loss[0, 0]


def swapvae_forward_ref(x, y, noise, mask, eps, p):
    """Pure-JAX f32 reference (unfused, per-view) for correctness checking."""
    n1, n2 = noise[:B], noise[B:]
    m1, m2 = mask[:B], mask[B:]
    e1, e2 = eps[:B], eps[B:]
    x1 = jnp.where(m1 > 0.6, 0.0, x + n1)
    x2 = jnp.where(m2 > 0.6, 0.0, x + n2)

    def encode(xi):
        h1 = jax.nn.relu(xi @ p["we1"] + p["be1"])
        h2 = jax.nn.relu(h1 @ p["we2"] + p["be2"])
        return (h2 @ p["we3c"] + p["be3c"], h2 @ p["we3m"] + p["be3m"],
                h2 @ p["we3v"] + p["be3v"], h2, h1)

    z1c, z1mu, z1lv, s1a, s1b = encode(x1)
    z2c, z2mu, z2lv, s2a, s2b = encode(x2)
    z1s = z1mu + jnp.exp(0.5 * z1lv) * e1
    z2s = z2mu + jnp.exp(0.5 * z2lv) * e2

    def decode(zc, zs, skip2, skip1):
        d1 = jax.nn.relu(zc @ p["wd1c"] + zs @ p["wd1s"] + p["bd1"] + skip2)
        d2 = jax.nn.relu(d1 @ p["wd2"] + p["bd2"] + skip1)
        return d2 @ p["wd3"] + p["bd3"]

    dec1, dec2 = decode(z1c, z1s, s1a, s1b), decode(z2c, z2s, s2a, s2b)
    swap_loss = 0.5 * (jnp.mean((x1 - dec1) ** 2) + jnp.mean((x2 - dec2) ** 2))
    kl1 = -0.5 * jnp.mean(1 + z1lv - z1mu ** 2 - jnp.exp(z1lv), axis=-1)
    kl2 = -0.5 * jnp.mean(1 + z2lv - z2mu ** 2 - jnp.exp(z2lv), axis=-1)

    def aux(c):
        h = c @ p["wl1"] + p["bl1"]
        h = jnp.where(h >= 0, h, 0.7 * h)
        return (jax.nn.relu(h @ p["wo1"] + p["bo1"]),
                jax.nn.relu(h @ p["wo2"] + p["bo2"]))

    a11, a12 = aux(z1c)
    a21, a22 = aux(z2c)
    y0, y1 = y[:, 0:1], y[:, 1:2]
    aux_loss = 0.5 * ((jnp.mean((a11 - y0) ** 2) + jnp.mean((a12 - y1) ** 2)) +
                      (jnp.mean((a21 - y0) ** 2) + jnp.mean((a22 - y1) ** 2)))
    algn = jnp.mean((z1c - z2c) ** 2)
    loss_part2 = jnp.mean(BETA * (kl1 + kl2) + ALPHA * algn)
    return swap_loss + loss_part2 + aux_loss


if __name__ == "__main__":
    key = jax.random.PRNGKey(0)
    k_param, k_x, k_y, k_n, k_m, k_e = jax.random.split(key, 6)

    params = init_params(k_param)
    # Parameter slabs packed ONCE, outside the per-call path.
    w32, w48, w16 = pack_param_slabs(params)

    x = jax.random.normal(k_x, (B, F), jnp.float32)
    y = jax.random.normal(k_y, (B, 2), jnp.float32)
    # Randomness generated already stacked as [2B, .]
    noise = 0.2 * jax.random.normal(k_n, (2 * B, F), jnp.float32)
    mask = jax.random.uniform(k_m, (2 * B, F), jnp.float32)
    eps = jax.random.normal(k_e, (2 * B, L), jnp.float32)

    loss = swapvae_forward(x, y, noise, mask, eps, w32, w48, w16)
    loss = jax.block_until_ready(loss)

    loss_ref = swapvae_forward_ref(x, y, noise, mask, eps, params)
    # Tolerance loosened per review: MXU operands are bf16 (math stays f32).
    assert jnp.allclose(loss, loss_ref, rtol=2e-2, atol=1e-2), (loss, loss_ref)

    print("KERNEL_OK")
</pallas_src>

<mosaic_0001>
module attributes {stable_mosaic.version = 11 : i64} {
  func.func @swapvae_kernel(%arg0: memref<64x16xf32, #tpu.memory_space<vmem>>, %arg1: memref<176x32xbf16, #tpu.memory_space<vmem>>, %arg2: memref<64x48xbf16, #tpu.memory_space<vmem>>, %arg3: memref<80x16xbf16, #tpu.memory_space<vmem>>, %arg4: memref<1x1xf32, #tpu.memory_space<vmem>>) attributes {dimension_semantics = [], scalar_prefetch = 0 : i64, scratch_operands = 0 : i64, tpu.core_type = #tpu.core_type<tc>} {
    %c0 = arith.constant 0 : index
    %c0_0 = arith.constant 0 : index
    %0 = vector.load %arg0[%c0, %c0_0] : memref<64x16xf32, #tpu.memory_space<vmem>>, vector<8x16xf32>
    %c8 = arith.constant 8 : index
    %c0_1 = arith.constant 0 : index
    %1 = vector.load %arg0[%c8, %c0_1] : memref<64x16xf32, #tpu.memory_space<vmem>>, vector<8x16xf32>
    %c16 = arith.constant 16 : index
    %c0_2 = arith.constant 0 : index
    %2 = vector.load %arg0[%c16, %c0_2] : memref<64x16xf32, #tpu.memory_space<vmem>>, vector<16x16xf32>
    %c32 = arith.constant 32 : index
    %c0_3 = arith.constant 0 : index
    %3 = vector.load %arg0[%c32, %c0_3] : memref<64x16xf32, #tpu.memory_space<vmem>>, vector<16x16xf32>
    %c48 = arith.constant 48 : index
    %c0_4 = arith.constant 0 : index
    %4 = vector.load %arg0[%c48, %c0_4] : memref<64x16xf32, #tpu.memory_space<vmem>>, vector<16x16xf32>
    %c0_5 = arith.constant 0 : index
    %c0_6 = arith.constant 0 : index
    %5 = vector.load %arg1[%c0_5, %c0_6] : memref<176x32xbf16, #tpu.memory_space<vmem>>, vector<16x32xbf16>
    %c16_7 = arith.constant 16 : index
    %c0_8 = arith.constant 0 : index
    %6 = vector.load %arg1[%c16_7, %c0_8] : memref<176x32xbf16, #tpu.memory_space<vmem>>, vector<32x32xbf16>
    %c48_9 = arith.constant 48 : index
    %c0_10 = arith.constant 0 : index
    %7 = vector.load %arg1[%c48_9, %c0_10] : memref<176x32xbf16, #tpu.memory_space<vmem>>, vector<32x32xbf16>
    %c80 = arith.constant 80 : index
    %c0_11 = arith.constant 0 : index
    %8 = vector.load %arg1[%c80, %c0_11] : memref<176x32xbf16, #tpu.memory_space<vmem>>, vector<32x32xbf16>
    %c112 = arith.constant 112 : index
    %c0_12 = arith.constant 0 : index
    %9 = vector.load %arg1[%c112, %c0_12] : memref<176x32xbf16, #tpu.memory_space<vmem>>, vector<1x32xbf16>
    %10 = arith.extf %9 : vector<1x32xbf16> to vector<1x32xf32>
    %c128 = arith.constant 128 : index
    %c0_13 = arith.constant 0 : index
    %11 = vector.load %arg1[%c128, %c0_13] : memref<176x32xbf16, #tpu.memory_space<vmem>>, vector<1x32xbf16>
    %12 = arith.extf %11 : vector<1x32xbf16> to vector<1x32xf32>
    %c144 = arith.constant 144 : index
    %c0_14 = arith.constant 0 : index
    %13 = vector.load %arg1[%c144, %c0_14] : memref<176x32xbf16, #tpu.memory_space<vmem>>, vector<1x32xbf16>
    %14 = arith.extf %13 : vector<1x32xbf16> to vector<1x32xf32>
    %c160 = arith.constant 160 : index
    %c0_15 = arith.constant 0 : index
    %15 = vector.load %arg1[%c160, %c0_15] : memref<176x32xbf16, #tpu.memory_space<vmem>>, vector<1x32xbf16>
    %16 = arith.extf %15 : vector<1x32xbf16> to vector<1x32xf32>
    %c0_16 = arith.constant 0 : index
    %c0_17 = arith.constant 0 : index
    %17 = vector.load %arg2[%c0_16, %c0_17] : memref<64x48xbf16, #tpu.memory_space<vmem>>, vector<48x48xbf16>
    %c48_18 = arith.constant 48 : index
    %c0_19 = arith.constant 0 : index
    %18 = vector.load %arg2[%c48_18, %c0_19] : memref<64x48xbf16, #tpu.memory_space<vmem>>, vector<1x48xbf16>
    %19 = arith.extf %18 : vector<1x48xbf16> to vector<1x48xf32>
    %c0_20 = arith.constant 0 : index
    %c0_21 = arith.constant 0 : index
    %20 = vector.load %arg3[%c0_20, %c0_21] : memref<80x16xbf16, #tpu.memory_space<vmem>>, vector<32x16xbf16>
    %c32_22 = arith.constant 32 : index
    %c0_23 = arith.constant 0 : index
    %21 = vector.load %arg3[%c32_22, %c0_23] : memref<80x16xbf16, #tpu.memory_space<vmem>>, vector<16x16xbf16>
    %c48_24 = arith.constant 48 : index
    %c0_25 = arith.constant 0 : index
    %22 = vector.load %arg3[%c48_24, %c0_25] : memref<80x16xbf16, #tpu.memory_space<vmem>>, vector<1x16xbf16>
    %23 = arith.extf %22 : vector<1x16xbf16> to vector<1x16xf32>
    %c64 = arith.constant 64 : index
    %c0_26 = arith.constant 0 : index
    %24 = vector.load %arg3[%c64, %c0_26] : memref<80x16xbf16, #tpu.memory_space<vmem>>, vector<1x16xbf16>
    %25 = arith.extf %24 : vector<1x16xbf16> to vector<1x16xf32>
    %26 = tpu.concatenate %0, %0 in 0 : vector<8x16xf32>, vector<8x16xf32> -> vector<16x16xf32>
    %cst = arith.constant 6.000000e-01 : f32
    %27 = vector.broadcast %cst : f32 to vector<16x16xf32>
    %28 = arith.cmpf ogt, %3, %27 : vector<16x16xf32>
    %29 = arith.addf %26, %2 : vector<16x16xf32>
    %cst_27 = arith.constant 0.000000e+00 : f32
    %30 = vector.broadcast %cst_27 : f32 to vector<16x16xf32>
    %31 = arith.select %28, %30, %29 : vector<16x16xi1>, vector<16x16xf32>
    %32 = arith.truncf %31 : vector<16x16xf32> to vector<16x16xbf16>
    %cst_28 = arith.constant dense<0.000000e+00> : vector<16x32xf32>
    %33 = tpu.matmul %32, %5, %cst_28 {dimension_numbers = #tpu.dot_dimension_numbers<[1], [0], [0], [1], [0, 0, 1, 1], [], []>} : vector<16x16xbf16>, vector<16x32xbf16>, vector<16x32xf32> -> vector<16x32xf32>
    %34 = vector.broadcast %10 : vector<1x32xf32> to vector<16x32xf32>
    %35 = arith.addf %33, %34 : vector<16x32xf32>
    %cst_29 = arith.constant 0.000000e+00 : f32
    %36 = vector.broadcast %cst_29 : f32 to vector<16x32xf32>
    %37 = arith.maximumf %35, %36 : vector<16x32xf32>
    %38 = arith.truncf %37 : vector<16x32xf32> to vector<16x32xbf16>
    %cst_30 = arith.constant dense<0.000000e+00> : vector<16x32xf32>
    %39 = tpu.matmul %38, %6, %cst_30 {dimension_numbers = #tpu.dot_dimension_numbers<[1], [0], [0], [1], [0, 0, 1, 1], [], []>} : vector<16x32xbf16>, vector<32x32xbf16>, vector<16x32xf32> -> vector<16x32xf32>
    %40 = vector.broadcast %12 : vector<1x32xf32> to vector<16x32xf32>
    %41 = arith.addf %39, %40 : vector<16x32xf32>
    %cst_31 = arith.constant 0.000000e+00 : f32
    %42 = vector.broadcast %cst_31 : f32 to vector<16x32xf32>
    %43 = arith.maximumf %41, %42 : vector<16x32xf32>
    %44 = arith.truncf %43 : vector<16x32xf32> to vector<16x32xbf16>
    %cst_32 = arith.constant dense<0.000000e+00> : vector<16x32xf32>
    %45 = tpu.matmul %44, %7, %cst_32 {dimension_numbers = #tpu.dot_dimension_numbers<[1], [0], [0], [1], [0, 0, 1, 1], [], []>} : vector<16x32xbf16>, vector<32x32xbf16>, vector<16x32xf32> -> vector<16x32xf32>
    %46 = vector.broadcast %14 : vector<1x32xf32> to vector<16x32xf32>
    %47 = arith.addf %45, %46 : vector<16x32xf32>
    %48 = vector.extract_strided_slice %47 {offsets = [0, 16], sizes = [16, 8], strides = [1, 1]} : vector<16x32xf32> to vector<16x8xf32>
    %49 = vector.extract_strided_slice %47 {offsets = [0, 24], sizes = [16, 8], strides = [1, 1]} : vector<16x32xf32> to vector<16x8xf32>
    %cst_33 = arith.constant 5.000000e-01 : f32
    %50 = vector.broadcast %cst_33 : f32 to vector<16x8xf32>
    %51 = arith.mulf %50, %49 : vector<16x8xf32>
    %52 = math.exp %51 : vector<16x8xf32>
    %53 = vector.extract_strided_slice %4 {offsets = [0, 0], sizes = [16, 8], strides = [1, 1]} : vector<16x16xf32> to vector<16x8xf32>
    %54 = arith.mulf %52, %53 : vector<16x8xf32>
    %55 = arith.addf %48, %54 : vector<16x8xf32>
    %56 = tpu.concatenate %47, %55, %55 in 1 : vector<16x32xf32>, vector<16x8xf32>, vector<16x8xf32> -> vector<16x48xf32>
    %57 = arith.truncf %56 : vector<16x48xf32> to vector<16x48xbf16>
    %cst_34 = arith.constant dense<0.000000e+00> : vector<16x48xf32>
    %58 = tpu.matmul %57, %17, %cst_34 {dimension_numbers = #tpu.dot_dimension_numbers<[1], [0], [0], [1], [0, 0, 1, 1], [], []>} : vector<16x48xbf16>, vector<48x48xbf16>, vector<16x48xf32> -> vector<16x48xf32>
    %59 = vector.broadcast %19 : vector<1x48xf32> to vector<16x48xf32>
    %60 = arith.addf %58, %59 : vector<16x48xf32>
    %61 = vector.extract_strided_slice %60 {offsets = [0, 0], sizes = [16, 32], strides = [1, 1]} : vector<16x48xf32> to vector<16x32xf32>
    %62 = arith.addf %61, %43 : vector<16x32xf32>
    %cst_35 = arith.constant 0.000000e+00 : f32
    %63 = vector.broadcast %cst_35 : f32 to vector<16x32xf32>
    %64 = arith.maximumf %62, %63 : vector<16x32xf32>
    %65 = vector.extract_strided_slice %60 {offsets = [0, 32], sizes = [16, 16], strides = [1, 1]} : vector<16x48xf32> to vector<16x16xf32>
    %cst_36 = arith.constant 0.000000e+00 : f32
    %66 = vector.broadcast %cst_36 : f32 to vector<16x16xf32>
    %67 = arith.cmpf oge, %65, %66 : vector<16x16xf32>
    %cst_37 = arith.constant 0.699999988 : f32
    %68 = vector.broadcast %cst_37 : f32 to vector<16x16xf32>
    %69 = arith.mulf %68, %65 : vector<16x16xf32>
    %70 = arith.select %67, %65, %69 : vector<16x16xi1>, vector<16x16xf32>
    %71 = arith.truncf %64 : vector<16x32xf32> to vector<16x32xbf16>
    %cst_38 = arith.constant dense<0.000000e+00> : vector<16x32xf32>
    %72 = tpu.matmul %71, %8, %cst_38 {dimension_numbers = #tpu.dot_dimension_numbers<[1], [0], [0], [1], [0, 0, 1, 1], [], []>} : vector<16x32xbf16>, vector<32x32xbf16>, vector<16x32xf32> -> vector<16x32xf32>
    %73 = vector.broadcast %16 : vector<1x32xf32> to vector<16x32xf32>
    %74 = arith.addf %72, %73 : vector<16x32xf32>
    %75 = arith.addf %74, %37 : vector<16x32xf32>
    %cst_39 = arith.constant 0.000000e+00 : f32
    %76 = vector.broadcast %cst_39 : f32 to vector<16x32xf32>
    %77 = arith.maximumf %75, %76 : vector<16x32xf32>
    %78 = arith.truncf %77 : vector<16x32xf32> to vector<16x32xbf16>
    %cst_40 = arith.constant dense<0.000000e+00> : vector<16x16xf32>
    %79 = tpu.matmul %78, %20, %cst_40 {dimension_numbers = #tpu.dot_dimension_numbers<[1], [0], [0], [1], [0, 0, 1, 1], [], []>} : vector<16x32xbf16>, vector<32x16xbf16>, vector<16x16xf32> -> vector<16x16xf32>
    %80 = vector.broadcast %23 : vector<1x16xf32> to vector<16x16xf32>
    %81 = arith.addf %79, %80 : vector<16x16xf32>
    %82 = arith.truncf %70 : vector<16x16xf32> to vector<16x16xbf16>
    %cst_41 = arith.constant dense<0.000000e+00> : vector<16x16xf32>
    %83 = tpu.matmul %82, %21, %cst_41 {dimension_numbers = #tpu.dot_dimension_numbers<[1], [0], [0], [1], [0, 0, 1, 1], [], []>} : vector<16x16xbf16>, vector<16x16xbf16>, vector<16x16xf32> -> vector<16x16xf32>
    %84 = vector.broadcast %25 : vector<1x16xf32> to vector<16x16xf32>
    %85 = arith.addf %83, %84 : vector<16x16xf32>
    %cst_42 = arith.constant 0.000000e+00 : f32
    %86 = vector.broadcast %cst_42 : f32 to vector<16x16xf32>
    %87 = arith.maximumf %85, %86 : vector<16x16xf32>
    %88 = tpu.concatenate %1, %1 in 0 : vector<8x16xf32>, vector<8x16xf32> -> vector<16x16xf32>
    %89 = arith.subf %31, %81 : vector<16x16xf32>
    %90 = arith.subf %87, %88 : vector<16x16xf32>
    %91 = arith.mulf %89, %89 : vector<16x16xf32>
    %cst_43 = arith.constant 3.906250e-03 : f32
    %92 = vector.broadcast %cst_43 : f32 to vector<16x16xf32>
    %93 = arith.mulf %92, %91 : vector<16x16xf32>
    %94 = arith.mulf %90, %90 : vector<16x16xf32>
    %cst_44 = arith.constant 6.250000e-02 : f32
    %95 = vector.broadcast %cst_44 : f32 to vector<16x16xf32>
    %96 = arith.mulf %95, %94 : vector<16x16xf32>
    %97 = arith.addf %93, %96 : vector<16x16xf32>
    %cst_45 = arith.constant 1.000000e+00 : f32
    %98 = vector.broadcast %cst_45 : f32 to vector<16x8xf32>
    %99 = arith.addf %98, %49 : vector<16x8xf32>
    %100 = arith.mulf %48, %48 : vector<16x8xf32>
    %101 = arith.subf %99, %100 : vector<16x8xf32>
    %102 = math.exp %49 : vector<16x8xf32>
    %103 = arith.subf %101, %102 : vector<16x8xf32>
    %104 = vector.extract_strided_slice %47 {offsets = [0, 0], sizes = [8, 16], strides = [1, 1]} : vector<16x32xf32> to vector<8x16xf32>
    %105 = vector.extract_strided_slice %47 {offsets = [8, 0], sizes = [8, 16], strides = [1, 1]} : vector<16x32xf32> to vector<8x16xf32>
    %106 = arith.subf %104, %105 : vector<8x16xf32>
    %107 = vector.shape_cast %97 : vector<16x16xf32> to vector<1x16x16xf32>
    %cst_46 = arith.constant dense<0.000000e+00> : vector<1xf32>
    %108 = vector.multi_reduction <add>, %107, %cst_46 [1, 2] : vector<1x16x16xf32> to vector<1xf32>
    %109 = vector.shape_cast %108 : vector<1xf32> to vector<1x1x1xf32>
    %110 = vector.extract %109[0, 0, 0] : f32 from vector<1x1x1xf32>
    %111 = vector.shape_cast %103 : vector<16x8xf32> to vector<1x16x8xf32>
    %cst_47 = arith.constant dense<0.000000e+00> : vector<1xf32>
    %112 = vector.multi_reduction <add>, %111, %cst_47 [1, 2] : vector<1x16x8xf32> to vector<1xf32>
    %113 = vector.shape_cast %112 : vector<1xf32> to vector<1x1x1xf32>
    %114 = vector.extract %113[0, 0, 0] : f32 from vector<1x1x1xf32>
    %cst_48 = arith.constant -3.906250e-03 : f32
    %115 = arith.mulf %cst_48, %114 : f32
    %116 = arith.addf %110, %115 : f32
    %117 = arith.mulf %106, %106 : vector<8x16xf32>
    %118 = vector.shape_cast %117 : vector<8x16xf32> to vector<1x8x16xf32>
    %cst_49 = arith.constant dense<0.000000e+00> : vector<1xf32>
    %119 = vector.multi_reduction <add>, %118, %cst_49 [1, 2] : vector<1x8x16xf32> to vector<1xf32>
    %120 = vector.shape_cast %119 : vector<1xf32> to vector<1x1x1xf32>
    %121 = vector.extract %120[0, 0, 0] : f32 from vector<1x1x1xf32>
    %cst_50 = arith.constant 2.343750e-03 : f32
    %122 = arith.mulf %cst_50, %121 : f32
    %123 = arith.addf %116, %122 : f32
    %124 = vector.broadcast %123 : f32 to vector<1x1xf32>
    %c0_51 = arith.constant 0 : index
    %c0_52 = arith.constant 0 : index
    %125 = vector.load %arg4[%c0_51, %c0_52] : memref<1x1xf32, #tpu.memory_space<vmem>>, vector<1x1xf32>
    tpu.vector_store %arg4[%c0_51, %c0_52], %124 {strides = array<i32>} : memref<1x1xf32, #tpu.memory_space<vmem>>, vector<1x1xf32>,
    return
  }
}

</mosaic_0001>

<llo_original>
// kernel: swapvae_forward.1
$region0: #{swapvae_forward.1}
  #allocation0 [shape = 'u32[]', space=smem, size = 0x4, offset = 0x4, fixed_abs, tag = 'smem constant byte address 0x4 - core index']
  #allocation1 [shape = 'u32[144,128]{1,0:T(1,128)}', space=vmem, size = 0x12000, scoped, tag = 'internal scratch']
  %s0 = inlined_call_operand.vmem [shape: f32[64,16], index: 0, kind: input, shape index: {}]
  %s1 = inlined_call_operand.vmem [shape: bf16[176,32], index: 1, kind: input, shape index: {}]
  %s2 = inlined_call_operand.vmem [shape: bf16[64,48], index: 2, kind: input, shape index: {}]
  %s3 = inlined_call_operand.vmem [shape: bf16[80,16], index: 3, kind: input, shape index: {}]
  %s4 = inlined_call_operand.hbm [shape: f32[1,1], index: 4, kind: output, shape index: {}]
  %s5 = sld [smem:[#allocation0]]
  $region26: #{swapvae_forward.1} parent=0
    _
  %s7 = ssub.s32 1, %s5
  %s8 = scalar_select 0, %s7, %s5
  $region1: #{swapvae_forward.1} parent=0
    #allocation2 [shape = 'u8[512]{0}', space=vmem, size = 0x400, scoped, tag = 'output window, operand 0, single buffered']
    #allocation3 [shape = 's32[1]{0}', space=sflag, size = 0x4, scoped, tag = 'scoped memory for swapvae_forward.1']
    %9 = vsyncpa [#allocation3], 0
    // Predicated region
    $region2: #{swapvae_forward.1} parent=1 // pred_check
      _
    $region3: #{swapvae_forward.1} parent=1 // pred_check_branch
      %11 = sbr.rel (0) target = $region5
    $region4: #{swapvae_forward.1} parent=1 // pred_region
      _
    $region5: #{swapvae_forward.1} parent=1 // pred_fallthru
      _
    // Predicated region
    $region6: #{swapvae_forward.1} parent=1 // pred_check
      _
    $region7: #{swapvae_forward.1} parent=1 // pred_check_branch
      %13 = sbr.rel (0) target = $region9
    $region8: #{swapvae_forward.1} parent=1 // pred_region
      _
    $region9: #{swapvae_forward.1} parent=1 // pred_fallthru
      _
    // Predicated region
    $region10: #{swapvae_forward.1} parent=1 // pred_check
      _
    $region11: #{swapvae_forward.1} parent=1 // pred_check_branch
      %15 = sbr.rel (0) target = $region13
    $region12: #{swapvae_forward.1} parent=1 // pred_region
      _
    $region13: #{swapvae_forward.1} parent=1 // pred_fallthru
      _
    // Predicated region
    $region14: #{swapvae_forward.1} parent=1 // pred_check
      _
    $region15: #{swapvae_forward.1} parent=1 // pred_check_branch
      %17 = sbr.rel (0) target = $region17
    $region16: #{swapvae_forward.1} parent=1 // pred_region
      _
    $region17: #{swapvae_forward.1} parent=1 // pred_fallthru
      _
    %v19 = vld [vmem:[%s0] sm:$0xff]
    %v20 = vld [vmem:[%s0 + $0x8] sm:$0xff]
    %v21 = vld [vmem:[%s0 + $0x10] sm:$0xff]
    %v22 = vld [vmem:[%s0 + $0x18] sm:$0xff]
    %v23 = vld [vmem:[%s0 + $0x20] sm:$0xff]
    %v24 = vld [vmem:[%s0 + $0x28] sm:$0xff]
    %v25 = vld [vmem:[%s0 + $0x30] sm:$0xff]
    %v26 = vld [vmem:[%s0 + $0x38] sm:$0xff]
    %v27 = vld [vmem:[%s1] sm:$0xf]
    %v28 = vld [vmem:[%s1 + $0x4] sm:$0xf]
    %v29 = vld [vmem:[%s1 + $0x8] sm:$0xf]
    %v30 = vld [vmem:[%s1 + $0xc] sm:$0xf]
    %v31 = vld [vmem:[%s1 + $0x10] sm:$0xf]
    %v32 = vld [vmem:[%s1 + $0x14] sm:$0xf]
    %v33 = vld [vmem:[%s1 + $0x18] sm:$0xf]
    %v34 = vld [vmem:[%s1 + $0x1c] sm:$0xf]
    %v35 = vld [vmem:[%s1 + $0x20] sm:$0xf]
    %v36 = vld [vmem:[%s1 + $0x24] sm:$0xf]
    %v37 = vld [vmem:[%s1 + $0x28] sm:$0xf]
    %v38 = vld [vmem:[%s1 + $0x2c] sm:$0xf]
    %v39 = vld [vmem:[%s1 + $0x30] sm:$0xf]
    %v40 = vld [vmem:[%s1 + $0x34] sm:$0xf]
    %v41 = vld [vmem:[%s1 + $0x38] sm:$0x1]
    %v42 = vunpack.c.l.bf16 %v41
    %v43 = vld [vmem:[%s1 + $0x40] sm:$0x1]
    %v44 = vunpack.c.l.bf16 %v43
    %v45 = vld [vmem:[%s1 + $0x48] sm:$0x1]
    %v46 = vunpack.c.l.bf16 %v45
    %v47 = vld [vmem:[%s1 + $0x50] sm:$0x1]
    %v48 = vunpack.c.l.bf16 %v47
    %v49 = vld [vmem:[%s2] sm:$0xf]
    %v50 = vld [vmem:[%s2 + $0x4] sm:$0xf]
    %v51 = vld [vmem:[%s2 + $0x8] sm:$0xf]
    %v52 = vld [vmem:[%s2 + $0xc] sm:$0xf]
    %v53 = vld [vmem:[%s2 + $0x10] sm:$0xf]
    %v54 = vld [vmem:[%s2 + $0x14] sm:$0xf]
    %v55 = vld [vmem:[%s2 + $0x18] sm:$0x1]
    %v56 = vunpack.c.l.bf16 %v55
    %v57 = vld [vmem:[%s3] sm:$0xf]
    %v58 = vld [vmem:[%s3 + $0x4] sm:$0xf]
    %v59 = vld [vmem:[%s3 + $0x8] sm:$0xf]
    %v60 = vld [vmem:[%s3 + $0xc] sm:$0xf]
    %v61 = vld [vmem:[%s3 + $0x10] sm:$0xf]
    %v62 = vld [vmem:[%s3 + $0x14] sm:$0xf]
    %v63 = vld [vmem:[%s3 + $0x18] sm:$0x1]
    %v64 = vunpack.c.l.bf16 %v63
    %v65 = vld [vmem:[%s3 + $0x20] sm:$0x1]
    %v66 = vunpack.c.l.bf16 %v65
    %vm67 = vcmp.gt.f32.partialorder %v23, 0.6
    %vm68 = vcmp.gt.f32.partialorder %v24, 0.6
    %v69 = vadd.f32 %v19, %v21
    %v70 = vadd.f32 %v19, %v22
    %v71 = vsel %vm67, 0.0, %v69
    %v72 = vsel %vm68, 0.0, %v70
    %v73 = vpack.c.bf16 %v72, %v71
    %v74 = vlaneseq
    %v75 = vshrl.u32 %v74, 7
    %v76 = vsub.s32 0, %v75
    %v77 = vrot.slane %v42, %v76
    %v80 = vunpack.c.l.b16 %v27
    %v81 = vunpack.c.l.b16 %v28
    %v82 = vpack.c.b16 %v81, %v80
    %vm84 = vcmask 130048
    %v86 = vsel %vm84, %v73, 0
    %88 = vmatprep.subr.bf16.mxu0 0
    %89 = vmatpush1.bf16.msra.mxu0 %v82
    %90 = vmatprep.subr.bf16.mxu0 0
    %91 = vmatpush1.bf16.msra.mxu0 0
    %92 = vmatprep.subr.bf16.mxu0 0
    %93 = vmatpush1.bf16.msra.mxu0 0
    %94 = vmatprep.subr.bf16.mxu0 0
    %95 = vmatpush1.bf16.msra.mxu0 0
    %96 = vmatprep.subr.bf16.mxu0 0
    %97 = vmatpush1.bf16.msra.mxu0 0
    %98 = vmatprep.subr.bf16.mxu0 0
    %99 = vmatpush1.bf16.msra.mxu0 0
    %100 = vmatprep.subr.bf16.mxu0 0
    %101 = vmatpush1.bf16.msra.mxu0 0
    %102 = vmatprep.subr.bf16.mxu0 0
    %103 = vmatpush1.bf16.msra.mxu0 0
    %104 = vmatprep.subr.bf16.mxu0 0
    %105 = vmatpush1.bf16.msra.mxu0 0
    %106 = vmatprep.subr.bf16.mxu0 0
    %107 = vmatpush1.bf16.msra.mxu0 0
    %108 = vmatprep.subr.bf16.mxu0 0
    %109 = vmatpush1.bf16.msra.mxu0 0
    %110 = vmatprep.subr.bf16.mxu0 0
    %111 = vmatpush1.bf16.msra.mxu0 0
    %112 = vmatprep.subr.bf16.mxu0 0
    %113 = vmatpush1.bf16.msra.mxu0 0
    %114 = vmatprep.subr.bf16.mxu0 0
    %115 = vmatpush1.bf16.msra.mxu0 0
    %116 = vmatprep.subr.bf16.mxu0 0
    %117 = vmatpush1.bf16.msra.mxu0 0
    %118 = vmatprep.subr.bf16.mxu0 0
    %119 = vmatpush1.bf16.msra.mxu0 0
    %120 = vmatprep.mubr.bf16.mxu0 0
    %121 = vmatmul.mubr.bf16.gmra.mrb[0].mxu0 %v86
    %v122 = vpop.f32.mrb[0].mxu0
    %v123 = vadd.f32 %v77, %v122
    %v124 = vpop.f32.mrb[0].mxu0
    %v125 = vpop.f32.mrb[0].mxu0
    %v126 = vadd.f32 %v77, %v125
    %v127 = vpop.f32.mrb[0].mxu0
    %128 = vdwg.mxu0
    %v129 = vmax.f32 %v123, 0.0
    %v130 = vmax.f32 %v126, 0.0
    %v131 = vpack.c.bf16 %v130, %v129
    %v132 = vlaneseq
    %v133 = vshrl.u32 %v132, 7
    %v134 = vsub.s32 0, %v133
    %v135 = vrot.slane %v44, %v134
    %v140 = vunpack.c.l.b16 %v29
    %v141 = vunpack.c.l.b16 %v30
    %v142 = vunpack.c.l.b16 %v31
    %v143 = vunpack.c.l.b16 %v32
    %v144 = vpack.c.b16 %v141, %v140
    %v145 = vpack.c.b16 %v143, %v142
    %vm148 = vcmask 261120
    %v150 = vsel %vm148, %v131, 0
    %152 = vmatprep.subr.bf16.mxu0 0
    %153 = vmatpush1.bf16.msra.mxu0 %v144
    %154 = vmatprep.subr.bf16.mxu0 0
    %155 = vmatpush1.bf16.msra.mxu0 %v145
    %156 = vmatprep.subr.bf16.mxu0 0
    %157 = vmatpush1.bf16.msra.mxu0 0
    %158 = vmatprep.subr.bf16.mxu0 0
    %159 = vmatpush1.bf16.msra.mxu0 0
    %160 = vmatprep.subr.bf16.mxu0 0
    %161 = vmatpush1.bf16.msra.mxu0 0
    %162 = vmatprep.subr.bf16.mxu0 0
    %163 = vmatpush1.bf16.msra.mxu0 0
    %164 = vmatprep.subr.bf16.mxu0 0
    %165 = vmatpush1.bf16.msra.mxu0 0
    %166 = vmatprep.subr.bf16.mxu0 0
    %167 = vmatpush1.bf16.msra.mxu0 0
    %168 = vmatprep.subr.bf16.mxu0 0
    %169 = vmatpush1.bf16.msra.mxu0 0
    %170 = vmatprep.subr.bf16.mxu0 0
    %171 = vmatpush1.bf16.msra.mxu0 0
    %172 = vmatprep.subr.bf16.mxu0 0
    %173 = vmatpush1.bf16.msra.mxu0 0
    %174 = vmatprep.subr.bf16.mxu0 0
    %175 = vmatpush1.bf16.msra.mxu0 0
    %176 = vmatprep.subr.bf16.mxu0 0
    %177 = vmatpush1.bf16.msra.mxu0 0
    %178 = vmatprep.subr.bf16.mxu0 0
    %179 = vmatpush1.bf16.msra.mxu0 0
    %180 = vmatprep.subr.bf16.mxu0 0
    %181 = vmatpush1.bf16.msra.mxu0 0
    %182 = vmatprep.subr.bf16.mxu0 0
    %183 = vmatpush1.bf16.msra.mxu0 0
    %184 = vmatprep.mubr.bf16.mxu0 0
    %185 = vmatmul.mubr.bf16.gmra.mrb[0].mxu0 %v150
    %v186 = vpop.f32.mrb[0].mxu0
    %v187 = vadd.f32 %v135, %v186
    %v188 = vpop.f32.mrb[0].mxu0
    %v189 = vpop.f32.mrb[0].mxu0
    %v190 = vadd.f32 %v135, %v189
    %v191 = vpop.f32.mrb[0].mxu0
    %192 = vdwg.mxu0
    %v193 = vmax.f32 %v187, 0.0
    %v194 = vmax.f32 %v190, 0.0
    %v195 = vpack.c.bf16 %v194, %v193
    %v196 = vlaneseq
    %v197 = vshrl.u32 %v196, 7
    %v198 = vsub.s32 0, %v197
    %v199 = vrot.slane %v46, %v198
    %v204 = vunpack.c.l.b16 %v33
    %v205 = vunpack.c.l.b16 %v34
    %v206 = vunpack.c.l.b16 %v35
    %v207 = vunpack.c.l.b16 %v36
    %v208 = vpack.c.b16 %v205, %v204
    %v209 = vpack.c.b16 %v207, %v206
    %v213 = vsel %vm148, %v195, 0
    %215 = vmatprep.subr.bf16.mxu0 0
    %216 = vmatpush1.bf16.msra.mxu0 %v208
    %217 = vmatprep.subr.bf16.mxu0 0
    %218 = vmatpush1.bf16.msra.mxu0 %v209
    %219 = vmatprep.subr.bf16.mxu0 0
    %220 = vmatpush1.bf16.msra.mxu0 0
    %221 = vmatprep.subr.bf16.mxu0 0
    %222 = vmatpush1.bf16.msra.mxu0 0
    %223 = vmatprep.subr.bf16.mxu0 0
    %224 = vmatpush1.bf16.msra.mxu0 0
    %225 = vmatprep.subr.bf16.mxu0 0
    %226 = vmatpush1.bf16.msra.mxu0 0
    %227 = vmatprep.subr.bf16.mxu0 0
    %228 = vmatpush1.bf16.msra.mxu0 0
    %229 = vmatprep.subr.bf16.mxu0 0
    %230 = vmatpush1.bf16.msra.mxu0 0
    %231 = vmatprep.subr.bf16.mxu0 0
    %232 = vmatpush1.bf16.msra.mxu0 0
    %233 = vmatprep.subr.bf16.mxu0 0
    %234 = vmatpush1.bf16.msra.mxu0 0
    %235 = vmatprep.subr.bf16.mxu0 0
    %236 = vmatpush1.bf16.msra.mxu0 0
    %237 = vmatprep.subr.bf16.mxu0 0
    %238 = vmatpush1.bf16.msra.mxu0 0
    %239 = vmatprep.subr.bf16.mxu0 0
    %240 = vmatpush1.bf16.msra.mxu0 0
    %241 = vmatprep.subr.bf16.mxu0 0
    %242 = vmatpush1.bf16.msra.mxu0 0
    %243 = vmatprep.subr.bf16.mxu0 0
    %244 = vmatpush1.bf16.msra.mxu0 0
    %245 = vmatprep.subr.bf16.mxu0 0
    %246 = vmatpush1.bf16.msra.mxu0 0
    %247 = vmatprep.mubr.bf16.mxu0 0
    %248 = vmatmul.mubr.bf16.gmra.mrb[0].mxu0 %v213
    %v249 = vpop.f32.mrb[0].mxu0
    %v250 = vadd.f32 %v199, %v249
    %v251 = vpop.f32.mrb[0].mxu0
    %v252 = vpop.f32.mrb[0].mxu0
    %v253 = vadd.f32 %v199, %v252
    %v254 = vpop.f32.mrb[0].mxu0
    %255 = vdwg.mxu0
    %v256 = vmul.f32 %v250, 0.5
    %v257 = vmul.f32 %v253, 0.5
    %v258 = vmul.f32 %v256, 1.442695
    %v259 = vpow.pop %v258
    %v260 = vmul.f32 %v257, 1.442695
    %v261 = vpow.pop %v260
    %264 = vrot.lane.b32.xlu0 %v25, 24
    %v265 = vpop.permute.xlu0 %264
    %266 = vrot.lane.b32.xlu0 %v26, 24
    %v267 = vpop.permute.xlu0 %266
    %v270 = vmul.f32 %v259, %v265
    %v271 = vmul.f32 %v261, %v267
    %274 = vrot.lane.b32.xlu0 %v270, 120
    %v275 = vpop.permute.xlu0 %274
    %276 = vrot.lane.b32.xlu0 %v271, 120
    %v277 = vpop.permute.xlu0 %276
    %v280 = vadd.f32 %v250, %v275
    %v281 = vadd.f32 %v253, %v277
    %284 = vrot.lane.b32.xlu0 %v280, 16
    %v285 = vpop.permute.xlu0 %284
    %286 = vrot.lane.b32.xlu0 %v281, 16
    %v287 = vpop.permute.xlu0 %286
    %290 = vrot.lane.b32.xlu0 %v280, 24
    %v291 = vpop.permute.xlu0 %290
    %292 = vrot.lane.b32.xlu0 %v281, 24
    %v293 = vpop.permute.xlu0 %292
    %v296 = vsel %vm148, %v250, %v285
    %v297 = vsel %vm148, %v253, %v287
    %vm298 = vcmask 326656
    %v299 = vsel %vm298, %v296, %v291
    %v300 = vsel %vm298, %v297, %v293
    %v301 = vpack.c.bf16 %v300, %v299
    %v302 = vlaneseq
    %v303 = vshrl.u32 %v302, 7
    %v304 = vsub.s32 0, %v303
    %v305 = vrot.slane %v56, %v304
    %v312 = vunpack.c.l.b16 %v49
    %v313 = vunpack.c.l.b16 %v50
    %v314 = vunpack.c.l.b16 %v51
    %v315 = vunpack.c.l.b16 %v52
    %v316 = vunpack.c.l.b16 %v53
    %v317 = vunpack.c.l.b16 %v54
    %v318 = vpack.c.b16 %v313, %v312
    %v319 = vpack.c.b16 %v315, %v314
    %v320 = vpack.c.b16 %v317, %v316
    %vm324 = vcmask 392192
    %v326 = vsel %vm324, %v301, 0
    %328 = vmatprep.subr.bf16.mxu0 0
    %329 = vmatpush1.bf16.msra.mxu0 %v318
    %330 = vmatprep.subr.bf16.mxu0 0
    %331 = vmatpush1.bf16.msra.mxu0 %v319
    %332 = vmatprep.subr.bf16.mxu0 0
    %333 = vmatpush1.bf16.msra.mxu0 %v320
    %334 = vmatprep.subr.bf16.mxu0 0
    %335 = vmatpush1.bf16.msra.mxu0 0
    %336 = vmatprep.subr.bf16.mxu0 0
    %337 = vmatpush1.bf16.msra.mxu0 0
    %338 = vmatprep.subr.bf16.mxu0 0
    %339 = vmatpush1.bf16.msra.mxu0 0
    %340 = vmatprep.subr.bf16.mxu0 0
    %341 = vmatpush1.bf16.msra.mxu0 0
    %342 = vmatprep.subr.bf16.mxu0 0
    %343 = vmatpush1.bf16.msra.mxu0 0
    %344 = vmatprep.subr.bf16.mxu0 0
    %345 = vmatpush1.bf16.msra.mxu0 0
    %346 = vmatprep.subr.bf16.mxu0 0
    %347 = vmatpush1.bf16.msra.mxu0 0
    %348 = vmatprep.subr.bf16.mxu0 0
    %349 = vmatpush1.bf16.msra.mxu0 0
    %350 = vmatprep.subr.bf16.mxu0 0
    %351 = vmatpush1.bf16.msra.mxu0 0
    %352 = vmatprep.subr.bf16.mxu0 0
    %353 = vmatpush1.bf16.msra.mxu0 0
    %354 = vmatprep.subr.bf16.mxu0 0
    %355 = vmatpush1.bf16.msra.mxu0 0
    %356 = vmatprep.subr.bf16.mxu0 0
    %357 = vmatpush1.bf16.msra.mxu0 0
    %358 = vmatprep.subr.bf16.mxu0 0
    %359 = vmatpush1.bf16.msra.mxu0 0
    %360 = vmatprep.mubr.bf16.mxu0 0
    %361 = vmatmul.mubr.bf16.gmra.mrb[0].mxu0 %v326
    %v362 = vpop.f32.mrb[0].mxu0
    %v363 = vadd.f32 %v305, %v362
    %v364 = vpop.f32.mrb[0].mxu0
    %v365 = vpop.f32.mrb[0].mxu0
    %v366 = vadd.f32 %v305, %v365
    %v367 = vpop.f32.mrb[0].mxu0
    %368 = vdwg.mxu0
    %v369 = vadd.f32 %v363, %v193
    %v370 = vadd.f32 %v366, %v194
    %v371 = vmax.f32 %v369, 0.0
    %v372 = vmax.f32 %v370, 0.0
    %vm373 = vcmp.ge.f32.partialorder %v363, 0.0
    %vm374 = vcmp.ge.f32.partialorder %v366, 0.0
    %v375 = vmul.f32 %v363, 0.7
    %v376 = vmul.f32 %v366, 0.7
    %v377 = vsel %vm373, %v363, %v375
    %v378 = vsel %vm374, %v366, %v376
    %v379 = vpack.c.bf16 %v372, %v371
    %v380 = vlaneseq
    %v381 = vshrl.u32 %v380, 7
    %v382 = vsub.s32 0, %v381
    %v383 = vrot.slane %v48, %v382
    %v388 = vunpack.c.l.b16 %v37
    %v389 = vunpack.c.l.b16 %v38
    %v390 = vunpack.c.l.b16 %v39
    %v391 = vunpack.c.l.b16 %v40
    %v392 = vpack.c.b16 %v389, %v388
    %v393 = vpack.c.b16 %v391, %v390
    %v397 = vsel %vm148, %v379, 0
    %399 = vmatprep.subr.bf16.mxu0 0
    %400 = vmatpush1.bf16.msra.mxu0 %v392
    %401 = vmatprep.subr.bf16.mxu0 0
    %402 = vmatpush1.bf16.msra.mxu0 %v393
    %403 = vmatprep.subr.bf16.mxu0 0
    %404 = vmatpush1.bf16.msra.mxu0 0
    %405 = vmatprep.subr.bf16.mxu0 0
    %406 = vmatpush1.bf16.msra.mxu0 0
    %407 = vmatprep.subr.bf16.mxu0 0
    %408 = vmatpush1.bf16.msra.mxu0 0
    %409 = vmatprep.subr.bf16.mxu0 0
    %410 = vmatpush1.bf16.msra.mxu0 0
    %411 = vmatprep.subr.bf16.mxu0 0
    %412 = vmatpush1.bf16.msra.mxu0 0
    %413 = vmatprep.subr.bf16.mxu0 0
    %414 = vmatpush1.bf16.msra.mxu0 0
    %415 = vmatprep.subr.bf16.mxu0 0
    %416 = vmatpush1.bf16.msra.mxu0 0
    %417 = vmatprep.subr.bf16.mxu0 0
    %418 = vmatpush1.bf16.msra.mxu0 0
    %419 = vmatprep.subr.bf16.mxu0 0
    %420 = vmatpush1.bf16.msra.mxu0 0
    %421 = vmatprep.subr.bf16.mxu0 0
    %422 = vmatpush1.bf16.msra.mxu0 0
    %423 = vmatprep.subr.bf16.mxu0 0
    %424 = vmatpush1.bf16.msra.mxu0 0
    %425 = vmatprep.subr.bf16.mxu0 0
    %426 = vmatpush1.bf16.msra.mxu0 0
    %427 = vmatprep.subr.bf16.mxu0 0
    %428 = vmatpush1.bf16.msra.mxu0 0
    %429 = vmatprep.subr.bf16.mxu0 0
    %430 = vmatpush1.bf16.msra.mxu0 0
    %431 = vmatprep.mubr.bf16.mxu0 0
    %432 = vmatmul.mubr.bf16.gmra.mrb[0].mxu0 %v397
    %v433 = vpop.f32.mrb[0].mxu0
    %v434 = vadd.f32 %v383, %v433
    %v435 = vpop.f32.mrb[0].mxu0
    %v436 = vpop.f32.mrb[0].mxu0
    %v437 = vadd.f32 %v383, %v436
    %v438 = vpop.f32.mrb[0].mxu0
    %439 = vdwg.mxu0
    %v440 = vadd.f32 %v434, %v129
    %v441 = vadd.f32 %v437, %v130
    %v442 = vmax.f32 %v440, 0.0
    %v443 = vmax.f32 %v441, 0.0
    %v444 = vpack.c.bf16 %v443, %v442
    %v445 = vlaneseq
    %v446 = vshrl.u32 %v445, 7
    %v447 = vsub.s32 0, %v446
    %v448 = vrot.slane %v64, %v447
    %v453 = vunpack.c.l.b16 %v57
    %v454 = vunpack.c.l.b16 %v58
    %v455 = vunpack.c.l.b16 %v59
    %v456 = vunpack.c.l.b16 %v60
    %v457 = vpack.c.b16 %v454, %v453
    %v458 = vpack.c.b16 %v456, %v455
    %v462 = vsel %vm148, %v444, 0
    %464 = vmatprep.subr.bf16.mxu0 0
    %465 = vmatpush1.bf16.msra.mxu0 %v457
    %466 = vmatprep.subr.bf16.mxu0 0
    %467 = vmatpush1.bf16.msra.mxu0 %v458
    %468 = vmatprep.subr.bf16.mxu0 0
    %469 = vmatpush1.bf16.msra.mxu0 0
    %470 = vmatprep.subr.bf16.mxu0 0
    %471 = vmatpush1.bf16.msra.mxu0 0
    %472 = vmatprep.subr.bf16.mxu0 0
    %473 = vmatpush1.bf16.msra.mxu0 0
    %474 = vmatprep.subr.bf16.mxu0 0
    %475 = vmatpush1.bf16.msra.mxu0 0
    %476 = vmatprep.subr.bf16.mxu0 0
    %477 = vmatpush1.bf16.msra.mxu0 0
    %478 = vmatprep.subr.bf16.mxu0 0
    %479 = vmatpush1.bf16.msra.mxu0 0
    %480 = vmatprep.subr.bf16.mxu0 0
    %481 = vmatpush1.bf16.msra.mxu0 0
    %482 = vmatprep.subr.bf16.mxu0 0
    %483 = vmatpush1.bf16.msra.mxu0 0
    %484 = vmatprep.subr.bf16.mxu0 0
    %485 = vmatpush1.bf16.msra.mxu0 0
    %486 = vmatprep.subr.bf16.mxu0 0
    %487 = vmatpush1.bf16.msra.mxu0 0
    %488 = vmatprep.subr.bf16.mxu0 0
    %489 = vmatpush1.bf16.msra.mxu0 0
    %490 = vmatprep.subr.bf16.mxu0 0
    %491 = vmatpush1.bf16.msra.mxu0 0
    %492 = vmatprep.subr.bf16.mxu0 0
    %493 = vmatpush1.bf16.msra.mxu0 0
    %494 = vmatprep.subr.bf16.mxu0 0
    %495 = vmatpush1.bf16.msra.mxu0 0
    %496 = vmatprep.mubr.bf16.mxu0 0
    %497 = vmatmul.mubr.bf16.gmra.mrb[0].mxu0 %v462
    %v498 = vpop.f32.mrb[0].mxu0
    %v499 = vadd.f32 %v448, %v498
    %v500 = vpop.f32.mrb[0].mxu0
    %v501 = vpop.f32.mrb[0].mxu0
    %v502 = vadd.f32 %v448, %v501
    %v503 = vpop.f32.mrb[0].mxu0
    %504 = vdwg.mxu0
    %v505 = vpack.c.bf16 %v378, %v377
    %v506 = vlaneseq
    %v507 = vshrl.u32 %v506, 7
    %v508 = vsub.s32 0, %v507
    %v509 = vrot.slane %v66, %v508
    %511 = vrot.lane.b32.xlu0 %v505, 96
    %v512 = vpop.permute.xlu0 %511
    %v515 = vunpack.c.l.b16 %v61
    %v516 = vunpack.c.l.b16 %v62
    %v517 = vpack.c.b16 %v516, %v515
    %v520 = vsel %vm84, %v512, 0
    %522 = vmatprep.subr.bf16.mxu0 0
    %523 = vmatpush1.bf16.msra.mxu0 %v517
    %524 = vmatprep.subr.bf16.mxu0 0
    %525 = vmatpush1.bf16.msra.mxu0 0
    %526 = vmatprep.subr.bf16.mxu0 0
    %527 = vmatpush1.bf16.msra.mxu0 0
    %528 = vmatprep.subr.bf16.mxu0 0
    %529 = vmatpush1.bf16.msra.mxu0 0
    %530 = vmatprep.subr.bf16.mxu0 0
    %531 = vmatpush1.bf16.msra.mxu0 0
    %532 = vmatprep.subr.bf16.mxu0 0
    %533 = vmatpush1.bf16.msra.mxu0 0
    %534 = vmatprep.subr.bf16.mxu0 0
    %535 = vmatpush1.bf16.msra.mxu0 0
    %536 = vmatprep.subr.bf16.mxu0 0
    %537 = vmatpush1.bf16.msra.mxu0 0
    %538 = vmatprep.subr.bf16.mxu0 0
    %539 = vmatpush1.bf16.msra.mxu0 0
    %540 = vmatprep.subr.bf16.mxu0 0
    %541 = vmatpush1.bf16.msra.mxu0 0
    %542 = vmatprep.subr.bf16.mxu0 0
    %543 = vmatpush1.bf16.msra.mxu0 0
    %544 = vmatprep.subr.bf16.mxu0 0
    %545 = vmatpush1.bf16.msra.mxu0 0
    %546 = vmatprep.subr.bf16.mxu0 0
    %547 = vmatpush1.bf16.msra.mxu0 0
    %548 = vmatprep.subr.bf16.mxu0 0
    %549 = vmatpush1.bf16.msra.mxu0 0
    %550 = vmatprep.subr.bf16.mxu0 0
    %551 = vmatpush1.bf16.msra.mxu0 0
    %552 = vmatprep.subr.bf16.mxu0 0
    %553 = vmatpush1.bf16.msra.mxu0 0
    %554 = vmatprep.mubr.bf16.mxu0 0
    %555 = vmatmul.mubr.bf16.gmra.mrb[0].mxu0 %v520
    %v556 = vpop.f32.mrb[0].mxu0
    %v557 = vadd.f32 %v509, %v556
    %v558 = vpop.f32.mrb[0].mxu0
    %v559 = vpop.f32.mrb[0].mxu0
    %v560 = vadd.f32 %v509, %v559
    %v561 = vpop.f32.mrb[0].mxu0
    %562 = vdwg.mxu0
    %v563 = vmax.f32 %v557, 0.0
    %v564 = vmax.f32 %v560, 0.0
    %v565 = vsub.f32 %v71, %v499
    %v566 = vsub.f32 %v72, %v502
    %v567 = vsub.f32 %v563, %v20
    %v568 = vsub.f32 %v564, %v20
    %v569 = vmul.f32 %v565, %v565
    %v570 = vmul.f32 %v566, %v566
    %v571 = vmul.f32 %v569, 0.00390625
    %v572 = vmul.f32 %v570, 0.00390625
    %v573 = vmul.f32 %v567, %v567
    %v574 = vmul.f32 %v568, %v568
    %v575 = vmul.f32 %v573, 0.0625
    %v576 = vmul.f32 %v574, 0.0625
    %v577 = vadd.f32 %v571, %v575
    %v578 = vadd.f32 %v572, %v576
    %v579 = vadd.f32 %v250, 1.0
    %v580 = vadd.f32 %v253, 1.0
    %v581 = vmul.f32 %v250, %v250
    %v582 = vmul.f32 %v253, %v253
    %585 = vrot.lane.b32.xlu0 %v581, 8
    %v586 = vpop.permute.xlu0 %585
    %587 = vrot.lane.b32.xlu0 %v582, 8
    %v588 = vpop.permute.xlu0 %587
    %v591 = vsub.f32 %v579, %v586
    %v592 = vsub.f32 %v580, %v588
    %v593 = vmul.f32 %v250, 1.442695
    %v594 = vpow.pop %v593
    %v595 = vmul.f32 %v253, 1.442695
    %v596 = vpow.pop %v595
    %v597 = vsub.f32 %v591, %v594
    %v598 = vsub.f32 %v592, %v596
    %v599 = vsub.f32 %v250, %v253
    %v600 = vsel %vm84, %v577, 0.0
    %v601 = vsel %vm84, %v578, 0.0
    %v602 = vadd.f32 %v600, %v601
    %603 = vadd.xlane.f32.xlu0 %v602
    %v604 = vpop.xlane.xlu0 %603
    %v605 = vrot.slane %v604, 4
    %v606 = vadd.f32 %v604, %v605
    %v607 = vrot.slane %v606, 2
    %v608 = vadd.f32 %v606, %v607
    %v609 = vrot.slane %v608, 1
    %v610 = vadd.f32 %v608, %v609
    %s611 = vtos %v610
    %614 = vrot.lane.b32.xlu0 %v597, 104
    %v615 = vpop.permute.xlu0 %614
    %616 = vrot.lane.b32.xlu0 %v598, 104
    %v617 = vpop.permute.xlu0 %616
    %vm620 = vcmask 64512
    %v621 = vsel %vm620, %v615, 0.0
    %v622 = vsel %vm620, %v617, 0.0
    %v623 = vadd.f32 %v621, %v622
    %624 = vadd.xlane.f32.xlu0 %v623
    %v625 = vpop.xlane.xlu0 %624
    %v626 = vrot.slane %v625, 4
    %v627 = vadd.f32 %v625, %v626
    %v628 = vrot.slane %v627, 2
    %v629 = vadd.f32 %v627, %v628
    %v630 = vrot.slane %v629, 1
    %v631 = vadd.f32 %v629, %v630
    %s632 = vtos %v631
    %s633 = smul.f32 %s632, -0.00390625
    %s634 = sadd.f32 %s611, %s633
    %v635 = vmul.f32 %v599, %v599
    %v636 = vsel %vm84, %v635, 0.0
    %637 = vadd.xlane.f32.xlu0 %v636
    %v638 = vpop.xlane.xlu0 %637
    %v639 = vrot.slane %v638, 4
    %v640 = vadd.f32 %v638, %v639
    %v641 = vrot.slane %v640, 2
    %v642 = vadd.f32 %v640, %v641
    %v643 = vrot.slane %v642, 1
    %v644 = vadd.f32 %v642, %v643
    %s645 = vtos %v644
    %s646 = smul.f32 %s645, 0.00234375
    %s647 = sadd.f32 %s634, %s646
    %v648 = vstv %s647
    %vm649 = vcmask 0
    %650 = vst.msk [vmem:[#allocation2] sm:$0x1] %vm649, %v648
    // Predicated region
    $region18: #{swapvae_forward.1} parent=1 // pred_check
      _
    $region19: #{swapvae_forward.1} parent=1 // pred_check_branch
      %652 = sbr.rel (0) target = $region21
    $region20: #{swapvae_forward.1} parent=1 // pred_region
      %s654 = ssub.s32 16, 16
      %655 = vsyncadd [#allocation3], %s654
      %s657 = sshll.u32 [#allocation2], 4
      %s658 = int_to_ptr.vmem [resolvable:$true] %s657
      %660 = dma.vmem_to_hbm [thread:$0]  %s658, 16, %s4, [#allocation3]
    $region21: #{swapvae_forward.1} parent=1 // pred_fallthru
      _
    // Predicated region
    $region22: #{swapvae_forward.1} parent=1 // pred_check
      _
    $region23: #{swapvae_forward.1} parent=1 // pred_check_branch
      %662 = sbr.rel (0) target = $region25
    $region24: #{swapvae_forward.1} parent=1 // pred_region
      %663 = dma.done [#allocation3], 16
    $region25: #{swapvae_forward.1} parent=1 // pred_fallthru
      _
    %664 = vsyncpa [#allocation3], 1

</llo_original>
